<compile_context>
chip_gen: v7x
topology: tpu7x:2x2x1
jax: 0.10.0
libtpu: 0.0.40
codegen_flags: <defaults>
</compile_context>

<pallas_src>
import functools
import math

import jax
import jax.numpy as jnp
from jax import lax
from jax.experimental import pallas as pl
from jax.experimental.pallas import tpu as pltpu

_LANES = 128
_MAX_TILE_ROWS = 8192          # 8192 * 128 * 4 B = 4 MiB per f32 tile buffer


def _channel_uniform_kernel(scalars_ref, seed_ref, v_ref,
                            vhat_ref, sqq_ref, sqn_ref,
                            *, tile_rows, k_inner, n_valid, need_mask):
    """One (tile_rows, 128) row-tile of one batch element.

    grid = (B, splits, k_inner):
      axis 0: batch element                       ("parallel")
      axis 1: core-split chunk of the row tiles   ("parallel"; size 1 unless B==1)
      axis 2: row tiles inside the chunk          ("arbitrary" reduction axis)
    """
    b = pl.program_id(0)
    s = pl.program_id(1)
    k = pl.program_id(2)

    a_c = scalars_ref[0]          # averagedC
    inv_a_c = scalars_ref[1]      # 1 / averagedC          (hoisted reciprocal)
    n_scale = scalars_ref[2]      # 2 * averagedC / 2^23   (folded noise scale)

    # zero the resident per-lane partial-sum accumulators for this (b, s) block
    @pl.when(k == 0)
    def _():
        sqq_ref[...] = jnp.zeros_like(sqq_ref)
        sqn_ref[...] = jnp.zeros_like(sqn_ref)

    # ---- per-element flat index (PRNG counter; also used for tail masking) --
    shape = (tile_rows, _LANES)
    row_i = lax.broadcasted_iota(jnp.int32, shape, 0)
    lane_i = lax.broadcasted_iota(jnp.int32, shape, 1)
    tile_id = s * k_inner + k                        # global row-tile index
    idx = (tile_id * tile_rows + row_i) * _LANES + lane_i

    # ---- in-kernel uniform noise: counter-based integer hash ----------------
    # plain jnp ops only (no pltpu.prng_*), so it lowers on Mosaic TPU and on
    # the interpret/CPU path, and keeps the noise off the HBM wire entirely.
    key = (seed_ref[0].astype(jnp.uint32) * jnp.uint32(0x9E3779B9)
           + b.astype(jnp.uint32) * jnp.uint32(0x85EBCA6B))
    x = idx.astype(jnp.uint32) * jnp.uint32(0xA511E9B3) + key
    x = x ^ (x >> jnp.uint32(16))
    x = x * jnp.uint32(0x7FEB352D)
    x = x ^ (x >> jnp.uint32(15))
    x = x * jnp.uint32(0x846CA68B)
    x = x ^ (x >> jnp.uint32(16))
    bits = (x >> jnp.uint32(9)).astype(jnp.int32)    # top 23 bits -> [0, 2^23)
    nsample = bits.astype(jnp.float32) * n_scale - a_c   # uniform in [-aC, aC)

    if need_mask:
        # Padded tail elements (idx >= N): v is zero-padded in the wrapper, so
        # zeroing the noise zeroes their contribution to both error sums.
        # Cost: one compare + one select (idx already exists for the hash),
        # and this code is only emitted at all when N % 128 != 0.
        nsample = jnp.where(idx < n_valid, nsample, 0.0)

    # ---- quantization + error partial sums ----------------------------------
    v = v_ref[...].astype(jnp.float32)               # (tile_rows, 128)
    v_hat = jnp.round(v * inv_a_c) * a_c             # STE forward value
    d_quan = (v + nsample) - v_hat                   # v_new - v_hat

    vhat_ref[...] = v_hat.astype(vhat_ref.dtype)
    sqq_ref[...] += jnp.sum(d_quan * d_quan, axis=0, keepdims=True)
    sqn_ref[...] += jnp.sum(nsample * nsample, axis=0, keepdims=True)


def _round_up(x, m):
    return -(-x // m) * m


def _choose_tiling(batch, rows, itemsize):
    """Pick (tile_rows, k_inner, splits, rows_pad).

    * tiles capped at _MAX_TILE_ROWS rows but otherwise as large as possible
      (amortizes per-grid-step overhead);
    * tile count is the minimum needed, so row padding is at most a few
      sublane-alignment rows (never a whole tile of wasted DMA/compute);
    * if batch == 1, the tile axis is split into 2 "parallel" chunks so both
      TensorCores get work on v7x (a plain nested loop on single-core chips).
    """
    splits = 2 if (batch == 1 and rows >= 16) else 1
    n_tiles = _round_up(max(1, -(-rows // _MAX_TILE_ROWS)), splits)
    if n_tiles == 1:
        tile_rows = rows                        # full-dim block: always legal
    else:
        align = max(8, 32 // itemsize)          # sublane packing (8 f32 / 16 bf16)
        tile_rows = _round_up(-(-rows // n_tiles), align)
    rows_pad = n_tiles * tile_rows
    return tile_rows, n_tiles // splits, splits, rows_pad


@functools.partial(jax.jit, static_argnames=("hidden_size", "height", "width"))
def channel_uniform_forward(v, sroot_c, seed, *, hidden_size, height, width):
    """v: (B, N) activations, sroot_c: (1,) parameter, seed: int32 PRNG seed.

    Returns (v_hat as (B, hidden_size, H, W), epsilon_sqQuan, epsilon_sq).
    """
    B, N = v.shape
    assert N == hidden_size * height * width

    a_c = jnp.square(sroot_c[0].astype(jnp.float32)) / math.sqrt(float(N))
    scalars = jnp.stack(
        [a_c, 1.0 / a_c, (2.0 * a_c) * (1.0 / float(1 << 23))]).astype(jnp.float32)
    seed_arr = jnp.asarray(seed, dtype=jnp.int32).reshape(1)

    itemsize = jnp.dtype(v.dtype).itemsize
    rows = -(-N // _LANES)                      # ceil(N / 128)
    tile_rows, k_inner, splits, rows_pad = _choose_tiling(B, rows, itemsize)
    n_pad = rows_pad * _LANES
    need_mask = n_pad != N                      # only for ragged N (N % 128 != 0)

    # pad (and later slice) only on the ragged path; reshape alone is free.
    vp = jnp.pad(v, ((0, 0), (0, n_pad - N))) if need_mask else v
    v3 = vp.reshape(B, rows_pad, _LANES)

    kernel = functools.partial(
        _channel_uniform_kernel, tile_rows=tile_rows, k_inner=k_inner,
        n_valid=N, need_mask=need_mask)

    # double-buffered in + out tile buffers + partial-sum blocks + headroom
    tile_bytes = tile_rows * _LANES * itemsize
    vmem_limit = int(max(4 * tile_bytes + (2 << 20), 16 << 20))

    v_map = lambda b, s, k, ki=k_inner: (b, s * ki + k, 0)
    p_map = lambda b, s, k, sp=splits: (b * sp + s, 0, 0)

    vhat3, sqq, sqn = pl.pallas_call(
        kernel,
        out_shape=(
            jax.ShapeDtypeStruct((B, rows_pad, _LANES), v.dtype),
            jax.ShapeDtypeStruct((B * splits, 1, _LANES), jnp.float32),
            jax.ShapeDtypeStruct((B * splits, 1, _LANES), jnp.float32),
        ),
        grid_spec=pltpu.PrefetchScalarGridSpec(
            num_scalar_prefetch=0,
            grid=(B, splits, k_inner),
            in_specs=[
                pl.BlockSpec(memory_space=pltpu.MemorySpace.SMEM),  # [aC,1/aC,scale]
                pl.BlockSpec(memory_space=pltpu.MemorySpace.SMEM),  # seed
                pl.BlockSpec((pl.Squeezed(), tile_rows, _LANES), v_map),
            ],
            out_specs=[
                pl.BlockSpec((pl.Squeezed(), tile_rows, _LANES), v_map),   # v_hat
                pl.BlockSpec((pl.Squeezed(), 1, _LANES), p_map),           # quan partials
                pl.BlockSpec((pl.Squeezed(), 1, _LANES), p_map),           # noise partials
            ],
        ),
        compiler_params=pltpu.CompilerParams(
            dimension_semantics=("parallel", "parallel", "arbitrary"),
            vmem_limit_bytes=vmem_limit),
    )(scalars, seed_arr, v3)

    epsilon_sqQuan = jnp.mean(jnp.sum(sqq.reshape(B, -1), axis=1))
    epsilon_sq = jnp.mean(jnp.sum(sqn.reshape(B, -1), axis=1))

    vhat = vhat3.reshape(B, n_pad)
    if need_mask:
        vhat = vhat[:, :N]                      # ragged N only
    v_hat_nchw = vhat.reshape(B, hidden_size, height, width)
    return v_hat_nchw, epsilon_sqQuan, epsilon_sq


if __name__ == "__main__":
    # Module config (synthetic, deterministic): trainable=True, hidden_size=4
    B, hidden_size, height, width = 2, 4, 8, 8
    N = hidden_size * height * width                      # 256

    key = jax.random.PRNGKey(0)
    k_param, k_v = jax.random.split(key, 2)

    # nn.Parameter(torch.rand(1)) -> uniform[0,1) scalar parameter
    sroot_c = jax.random.uniform(k_param, (1,), dtype=jnp.float32)
    # input activations, flattened to (B, N) like the torch forward expects
    v = jax.random.normal(k_v, (B, N), dtype=jnp.float32)
    seed = 1234

    v_hat, eps_quan, eps_noise = channel_uniform_forward(
        v, sroot_c, seed, hidden_size=hidden_size, height=height, width=width)
    jax.block_until_ready((v_hat, eps_quan, eps_noise))

    # ---- checks -------------------------------------------------------------
    a_c_j = jnp.square(sroot_c[0]) / math.sqrt(float(N))
    v_hat_ref = jnp.round(v * (1.0 / a_c_j)) * a_c_j
    assert v_hat.shape == (B, hidden_size, height, width)
    assert jnp.allclose(v_hat.reshape(B, N), v_hat_ref, atol=1e-5), "v_hat mismatch"

    a_c = float(a_c_j)
    e_noise = float(eps_noise)
    e_quan = float(eps_quan)
    # E[epsilon_sq] = N * aC^2 / 3, relative std ~4% here -> very loose window
    assert 0.1 * N * a_c * a_c < e_noise < 0.6 * N * a_c * a_c, "epsilon_sq implausible"
    # |v_new - v_hat| <= |v - v_hat| + |nsample| < 1.5 * aC per element
    assert 0.0 < e_quan < N * (1.5 * a_c) ** 2, "epsilon_sqQuan outside hard bounds"

    # deterministic given the same seed (pure counter-based hash PRNG)
    v_hat2, eps_quan2, eps_noise2 = channel_uniform_forward(
        v, sroot_c, seed, hidden_size=hidden_size, height=height, width=width)
    jax.block_until_ready((v_hat2, eps_quan2, eps_noise2))
    assert jnp.array_equal(v_hat, v_hat2)
    assert float(eps_quan2) == e_quan and float(eps_noise2) == e_noise

    # ragged / masked path (N not a multiple of 128)
    h2, w2 = 10, 10
    N2 = hidden_size * h2 * w2                            # 400 -> padded to 512
    v2 = jax.random.normal(jax.random.PRNGKey(3), (B, N2), dtype=jnp.float32)
    v_hat_p, eq_p, en_p = channel_uniform_forward(
        v2, sroot_c, seed, hidden_size=hidden_size, height=h2, width=w2)
    jax.block_until_ready((v_hat_p, eq_p, en_p))
    a_c2_j = jnp.square(sroot_c[0]) / math.sqrt(float(N2))
    ref2 = jnp.round(v2 * (1.0 / a_c2_j)) * a_c2_j
    a_c2 = float(a_c2_j)
    assert jnp.allclose(v_hat_p.reshape(B, N2), ref2, atol=1e-5)
    assert 0.0 < float(en_p) < N2 * a_c2 * a_c2
    assert 0.0 < float(eq_p) < N2 * (1.5 * a_c2) ** 2

    # B == 1 path: row-tile axis is split across two "parallel" chunks
    h3 = w3 = 32
    N3 = hidden_size * h3 * w3                            # 4096 -> 32 rows, 2 chunks
    v_one = jax.random.normal(jax.random.PRNGKey(5), (1, N3), dtype=jnp.float32)
    v_hat_s, eq_s, en_s = channel_uniform_forward(
        v_one, sroot_c, seed, hidden_size=hidden_size, height=h3, width=w3)
    jax.block_until_ready((v_hat_s, eq_s, en_s))
    a_c3_j = jnp.square(sroot_c[0]) / math.sqrt(float(N3))
    ref3 = jnp.round(v_one * (1.0 / a_c3_j)) * a_c3_j
    a_c3 = float(a_c3_j)
    assert jnp.allclose(v_hat_s.reshape(1, N3), ref3, atol=1e-6)
    assert 0.1 * N3 * a_c3 ** 2 < float(en_s) < 0.6 * N3 * a_c3 ** 2
    assert 0.0 < float(eq_s) < N3 * (1.5 * a_c3) ** 2

    # bf16 activations stay bf16 on the wire (v_hat comes back bf16)
    v_bf = v.astype(jnp.bfloat16)
    v_hat_b, eq_b, en_b = channel_uniform_forward(
        v_bf, sroot_c, seed, hidden_size=hidden_size, height=height, width=width)
    jax.block_until_ready((v_hat_b, eq_b, en_b))
    assert v_hat_b.dtype == jnp.bfloat16
    ref_b = (jnp.round(v_bf.astype(jnp.float32) * (1.0 / a_c_j)) * a_c_j
             ).astype(jnp.bfloat16)
    assert jnp.allclose(v_hat_b.reshape(B, N).astype(jnp.float32),
                        ref_b.astype(jnp.float32), atol=1e-5)
    assert 0.0 < float(eq_b) < N * (1.5 * a_c) ** 2

    # TODO(synk): samples=False branch references an undefined `c` in the torch
    # source (upstream bug); not implemented.
    print("KERNEL_OK")
</pallas_src>

<mosaic_0001>
module attributes {stable_mosaic.version = 11 : i64} {
  func.func @_channel_uniform_kernel(%arg0: i32, %arg1: i32, %arg2: i32, %arg3: memref<3xf32, #tpu.memory_space<smem>>, %arg4: memref<1xi32, #tpu.memory_space<smem>>, %arg5: memref<1x2x128xf32, #tpu.memory_space<vmem>>, %arg6: memref<1x2x128xf32, #tpu.memory_space<vmem>>, %arg7: memref<1x1x128xf32, #tpu.memory_space<vmem>>, %arg8: memref<1x1x128xf32, #tpu.memory_space<vmem>>) attributes {dimension_semantics = [#tpu.dimension_semantics<parallel>, #tpu.dimension_semantics<parallel>, #tpu.dimension_semantics<arbitrary>], iteration_bounds = array<i64: 2, 1, 1>, scalar_prefetch = 0 : i64, scratch_operands = 0 : i64, tpu.core_type = #tpu.core_type<tc>, window_params = [{transform_indices = @transform_0, window_bounds = array<i64: 3>}, {transform_indices = @transform_1, window_bounds = array<i64: 1>}, {transform_indices = @transform_2, window_bounds = array<i64: 1, 2, 128>}, {transform_indices = @transform_3, window_bounds = array<i64: 1, 2, 128>}, {transform_indices = @transform_4, window_bounds = array<i64: 1, 1, 128>}, {transform_indices = @transform_5, window_bounds = array<i64: 1, 1, 128>}]} {
    %c0 = arith.constant 0 : index
    %0 = memref.load %arg3[%c0] : memref<3xf32, #tpu.memory_space<smem>>
    %c1 = arith.constant 1 : index
    %1 = memref.load %arg3[%c1] : memref<3xf32, #tpu.memory_space<smem>>
    %c2 = arith.constant 2 : index
    %2 = memref.load %arg3[%c2] : memref<3xf32, #tpu.memory_space<smem>>
    %c0_i32 = arith.constant 0 : i32
    %3 = arith.cmpi eq, %arg2, %c0_i32 : i32
    %4 = arith.extui %3 : i1 to i32
    %c0_i32_0 = arith.constant 0 : i32
    %5 = arith.cmpi ne, %4, %c0_i32_0 : i32
    scf.if %5 {
      %cst_22 = arith.constant 0.000000e+00 : f32
      %74 = vector.broadcast %cst_22 : f32 to vector<1x128xf32>
      %c0_23 = arith.constant 0 : index
      %c0_24 = arith.constant 0 : index
      %c0_25 = arith.constant 0 : index
      %75 = vector.load %arg7[%c0_23, %c0_24, %c0_25] : memref<1x1x128xf32, #tpu.memory_space<vmem>>, vector<1x1x128xf32>
      %76 = vector.shape_cast %75 : vector<1x1x128xf32> to vector<1x128xf32>
      %77 = vector.shape_cast %74 : vector<1x128xf32> to vector<1x1x128xf32>
      tpu.vector_store %arg7[%c0_23, %c0_24, %c0_25], %77 {strides = array<i32>} : memref<1x1x128xf32, #tpu.memory_space<vmem>>, vector<1x1x128xf32>,
      %cst_26 = arith.constant 0.000000e+00 : f32
      %78 = vector.broadcast %cst_26 : f32 to vector<1x128xf32>
      %c0_27 = arith.constant 0 : index
      %c0_28 = arith.constant 0 : index
      %c0_29 = arith.constant 0 : index
      %79 = vector.load %arg8[%c0_27, %c0_28, %c0_29] : memref<1x1x128xf32, #tpu.memory_space<vmem>>, vector<1x1x128xf32>
      %80 = vector.shape_cast %79 : vector<1x1x128xf32> to vector<1x128xf32>
      %81 = vector.shape_cast %78 : vector<1x128xf32> to vector<1x1x128xf32>
      tpu.vector_store %arg8[%c0_27, %c0_28, %c0_29], %81 {strides = array<i32>} : memref<1x1x128xf32, #tpu.memory_space<vmem>>, vector<1x1x128xf32>,
    } else {
    }
    %6 = tpu.iota {dimensions = array<i32: 0>} : vector<2x128xi32>
    %7 = tpu.iota {dimensions = array<i32: 1>} : vector<2x128xi32>
    %c1_i32 = arith.constant 1 : i32
    %8 = arith.muli %arg1, %c1_i32 : i32
    %9 = arith.addi %8, %arg2 : i32
    %c2_i32 = arith.constant 2 : i32
    %10 = arith.muli %9, %c2_i32 : i32
    %11 = vector.broadcast %10 : i32 to vector<2x128xi32>
    %12 = arith.addi %11, %6 : vector<2x128xi32>
    %c128_i32 = arith.constant 128 : i32
    %13 = vector.broadcast %c128_i32 : i32 to vector<2x128xi32>
    %14 = arith.muli %12, %13 : vector<2x128xi32>
    %15 = arith.addi %14, %7 : vector<2x128xi32>
    %c0_1 = arith.constant 0 : index
    %16 = memref.load %arg4[%c0_1] : memref<1xi32, #tpu.memory_space<smem>>
    %c-1640531527_i32 = arith.constant -1640531527 : i32
    %17 = arith.muli %16, %c-1640531527_i32 : i32
    %c-2048144789_i32 = arith.constant -2048144789 : i32
    %18 = arith.muli %arg0, %c-2048144789_i32 : i32
    %19 = arith.addi %17, %18 : i32
    %c-1525552717_i32 = arith.constant -1525552717 : i32
    %20 = vector.broadcast %c-1525552717_i32 : i32 to vector<2x128xi32>
    %21 = arith.muli %15, %20 : vector<2x128xi32>
    %22 = vector.broadcast %19 : i32 to vector<2x128xi32>
    %23 = arith.addi %21, %22 : vector<2x128xi32>
    %c16_i32 = arith.constant 16 : i32
    %24 = vector.broadcast %c16_i32 : i32 to vector<2x128xi32>
    %25 = arith.shrui %23, %24 : vector<2x128xi32>
    %26 = arith.xori %23, %25 : vector<2x128xi32>
    %c2146121005_i32 = arith.constant 2146121005 : i32
    %27 = vector.broadcast %c2146121005_i32 : i32 to vector<2x128xi32>
    %28 = arith.muli %26, %27 : vector<2x128xi32>
    %c15_i32 = arith.constant 15 : i32
    %29 = vector.broadcast %c15_i32 : i32 to vector<2x128xi32>
    %30 = arith.shrui %28, %29 : vector<2x128xi32>
    %31 = arith.xori %28, %30 : vector<2x128xi32>
    %c-2073254261_i32 = arith.constant -2073254261 : i32
    %32 = vector.broadcast %c-2073254261_i32 : i32 to vector<2x128xi32>
    %33 = arith.muli %31, %32 : vector<2x128xi32>
    %c16_i32_2 = arith.constant 16 : i32
    %34 = vector.broadcast %c16_i32_2 : i32 to vector<2x128xi32>
    %35 = arith.shrui %33, %34 : vector<2x128xi32>
    %36 = arith.xori %33, %35 : vector<2x128xi32>
    %c9_i32 = arith.constant 9 : i32
    %37 = vector.broadcast %c9_i32 : i32 to vector<2x128xi32>
    %38 = arith.shrui %36, %37 : vector<2x128xi32>
    %39 = arith.sitofp %38 : vector<2x128xi32> to vector<2x128xf32>
    %40 = vector.broadcast %2 : f32 to vector<2x128xf32>
    %41 = arith.mulf %39, %40 : vector<2x128xf32>
    %42 = vector.broadcast %0 : f32 to vector<2x128xf32>
    %43 = arith.subf %41, %42 : vector<2x128xf32>
    %c0_3 = arith.constant 0 : index
    %c0_4 = arith.constant 0 : index
    %c0_5 = arith.constant 0 : index
    %44 = vector.load %arg5[%c0_3, %c0_4, %c0_5] : memref<1x2x128xf32, #tpu.memory_space<vmem>>, vector<1x2x128xf32>
    %45 = vector.shape_cast %44 : vector<1x2x128xf32> to vector<2x128xf32>
    %46 = vector.broadcast %1 : f32 to vector<2x128xf32>
    %47 = arith.mulf %45, %46 : vector<2x128xf32>
    %48 = math.roundeven %47 : vector<2x128xf32>
    %49 = vector.broadcast %0 : f32 to vector<2x128xf32>
    %50 = arith.mulf %48, %49 : vector<2x128xf32>
    %51 = arith.addf %45, %43 : vector<2x128xf32>
    %52 = arith.subf %51, %50 : vector<2x128xf32>
    %c0_6 = arith.constant 0 : index
    %c0_7 = arith.constant 0 : index
    %c0_8 = arith.constant 0 : index
    %53 = vector.load %arg6[%c0_6, %c0_7, %c0_8] : memref<1x2x128xf32, #tpu.memory_space<vmem>>, vector<1x2x128xf32>
    %54 = vector.shape_cast %53 : vector<1x2x128xf32> to vector<2x128xf32>
    %55 = vector.shape_cast %50 : vector<2x128xf32> to vector<1x2x128xf32>
    tpu.vector_store %arg6[%c0_6, %c0_7, %c0_8], %55 {strides = array<i32>} : memref<1x2x128xf32, #tpu.memory_space<vmem>>, vector<1x2x128xf32>,
    %c0_9 = arith.constant 0 : index
    %c0_10 = arith.constant 0 : index
    %c0_11 = arith.constant 0 : index
    %56 = vector.load %arg7[%c0_9, %c0_10, %c0_11] : memref<1x1x128xf32, #tpu.memory_space<vmem>>, vector<1x1x128xf32>
    %57 = vector.shape_cast %56 : vector<1x1x128xf32> to vector<1x128xf32>
    %58 = arith.mulf %52, %52 : vector<2x128xf32>
    %cst = arith.constant dense<0.000000e+00> : vector<128xf32>
    %59 = vector.multi_reduction <add>, %58, %cst [0] : vector<2x128xf32> to vector<128xf32>
    %60 = vector.shape_cast %59 : vector<128xf32> to vector<1x128xf32>
    %61 = arith.addf %57, %60 : vector<1x128xf32>
    %c0_12 = arith.constant 0 : index
    %c0_13 = arith.constant 0 : index
    %c0_14 = arith.constant 0 : index
    %62 = vector.load %arg7[%c0_12, %c0_13, %c0_14] : memref<1x1x128xf32, #tpu.memory_space<vmem>>, vector<1x1x128xf32>
    %63 = vector.shape_cast %62 : vector<1x1x128xf32> to vector<1x128xf32>
    %64 = vector.shape_cast %61 : vector<1x128xf32> to vector<1x1x128xf32>
    tpu.vector_store %arg7[%c0_12, %c0_13, %c0_14], %64 {strides = array<i32>} : memref<1x1x128xf32, #tpu.memory_space<vmem>>, vector<1x1x128xf32>,
    %c0_15 = arith.constant 0 : index
    %c0_16 = arith.constant 0 : index
    %c0_17 = arith.constant 0 : index
    %65 = vector.load %arg8[%c0_15, %c0_16, %c0_17] : memref<1x1x128xf32, #tpu.memory_space<vmem>>, vector<1x1x128xf32>
    %66 = vector.shape_cast %65 : vector<1x1x128xf32> to vector<1x128xf32>
    %67 = arith.mulf %43, %43 : vector<2x128xf32>
    %cst_18 = arith.constant dense<0.000000e+00> : vector<128xf32>
    %68 = vector.multi_reduction <add>, %67, %cst_18 [0] : vector<2x128xf32> to vector<128xf32>
    %69 = vector.shape_cast %68 : vector<128xf32> to vector<1x128xf32>
    %70 = arith.addf %66, %69 : vector<1x128xf32>
    %c0_19 = arith.constant 0 : index
    %c0_20 = arith.constant 0 : index
    %c0_21 = arith.constant 0 : index
    %71 = vector.load %arg8[%c0_19, %c0_20, %c0_21] : memref<1x1x128xf32, #tpu.memory_space<vmem>>, vector<1x1x128xf32>
    %72 = vector.shape_cast %71 : vector<1x1x128xf32> to vector<1x128xf32>
    %73 = vector.shape_cast %70 : vector<1x128xf32> to vector<1x1x128xf32>
    tpu.vector_store %arg8[%c0_19, %c0_20, %c0_21], %73 {strides = array<i32>} : memref<1x1x128xf32, #tpu.memory_space<vmem>>, vector<1x1x128xf32>,
    return
  }
  func.func @transform_0(%arg0: i32, %arg1: i32, %arg2: i32) -> i32 {
    %c0_i32 = arith.constant 0 : i32
    %c0_i32_0 = arith.constant 0 : i32
    return %c0_i32 : i32
  }
  func.func @transform_1(%arg0: i32, %arg1: i32, %arg2: i32) -> i32 {
    %c0_i32 = arith.constant 0 : i32
    %c0_i32_0 = arith.constant 0 : i32
    return %c0_i32 : i32
  }
  func.func @transform_2(%arg0: i32, %arg1: i32, %arg2: i32) -> (i32, i32, i32) {
    %c1_i32 = arith.constant 1 : i32
    %0 = arith.muli %arg1, %c1_i32 : i32
    %1 = arith.addi %0, %arg2 : i32
    %c0_i32 = arith.constant 0 : i32
    %c0_i32_0 = arith.constant 0 : i32
    return %arg0, %1, %c0_i32 : i32, i32, i32
  }
  func.func @transform_3(%arg0: i32, %arg1: i32, %arg2: i32) -> (i32, i32, i32) {
    %c1_i32 = arith.constant 1 : i32
    %0 = arith.muli %arg1, %c1_i32 : i32
    %1 = arith.addi %0, %arg2 : i32
    %c0_i32 = arith.constant 0 : i32
    %c0_i32_0 = arith.constant 0 : i32
    return %arg0, %1, %c0_i32 : i32, i32, i32
  }
  func.func @transform_4(%arg0: i32, %arg1: i32, %arg2: i32) -> (i32, i32, i32) {
    %c1_i32 = arith.constant 1 : i32
    %0 = arith.muli %arg0, %c1_i32 : i32
    %1 = arith.addi %0, %arg1 : i32
    %c0_i32 = arith.constant 0 : i32
    %c0_i32_0 = arith.constant 0 : i32
    %c0_i32_1 = arith.constant 0 : i32
    return %1, %c0_i32, %c0_i32_0 : i32, i32, i32
  }
  func.func @transform_5(%arg0: i32, %arg1: i32, %arg2: i32) -> (i32, i32, i32) {
    %c1_i32 = arith.constant 1 : i32
    %0 = arith.muli %arg0, %c1_i32 : i32
    %1 = arith.addi %0, %arg1 : i32
    %c0_i32 = arith.constant 0 : i32
    %c0_i32_0 = arith.constant 0 : i32
    %c0_i32_1 = arith.constant 0 : i32
    return %1, %c0_i32, %c0_i32_0 : i32, i32, i32
  }
}

</mosaic_0001>

<llo_original>
// kernel: channel_uniform_forward.1
$region0: #{channel_uniform_forward.1}
  #allocation0 [shape = 'u32[]', space=smem, size = 0x4, offset = 0x4, fixed_abs, tag = 'smem constant byte address 0x4 - core index']
  #allocation1 [shape = 'u32[144,128]{1,0:T(1,128)}', space=vmem, size = 0x12000, scoped, tag = 'internal scratch']
  #allocation2 [shape = 's32[1]{0:T(128)S(6)}', space=smem, size = 0x200, scoped, tag = 'scoped memory for channel_uniform_forward.1']
  %s0 = inlined_call_operand.vmem [shape: f32[3], index: 0, kind: input, shape index: {}]
  %s1 = inlined_call_operand.<no memory space> [shape: s32[1], index: 1, kind: input, shape index: {}]
  %s2 = inlined_call_operand.vmem [shape: f32[2,2,128], index: 2, kind: input, shape index: {}]
  %s3 = inlined_call_operand.vmem [shape: f32[2,2,128], index: 3, kind: output, shape index: {0}]
  %s4 = inlined_call_operand.vmem [shape: f32[2,1,128], index: 4, kind: output, shape index: {1}]
  %s5 = inlined_call_operand.vmem [shape: f32[2,1,128], index: 5, kind: output, shape index: {2}]
  %6 = xla_tuple %s3, %s4, %s5
  %s7 = sld [smem:[#allocation0]]
  $region69: #{channel_uniform_forward.1} parent=0
    _
  %s9 = ssub.s32 1, %s7
  %s10 = scalar_select 0, %s9, %s7
  %11 = sst [smem:[#allocation2]] %s1
  $region1: #{channel_uniform_forward.1} parent=0
    #allocation3 [shape = 'u8[512]{0}', space=smem, size = 0x200, scoped, tag = 'input window, operand 0, single buffered']
    #allocation4 [shape = 's32[2]{0}', space=sflag, size = 0x8, scoped, tag = 'scoped memory for channel_uniform_forward.1']
    %12 = vsyncpa [#allocation4], 0
    loop: start=0, step=1, limit=4
    $region2: #{channel_uniform_forward.1} parent=1 // loop_pre_header
      _
    $region3: #{channel_uniform_forward.1} parent=1 // loop_header
      %s14 = sphi 0, %s18
      %p15 = scmp.ge.s32.totalorder %s14, 4
      %s21 = sphi 0, %s40
      %s22 = sphi 0, %s36
      %s23 = sphi 0, %s32
      %s24 = sphi 0, %s21
      %s25 = sphi 0, %s22
      %s26 = sphi 0, %s23
      %s27 = sphi 0, %s24
      %s28 = sphi 0, %s25
      %s29 = sphi 0, %s26
      %s41 = sphi 0, %s41
      %s43 = sphi 0, %s41
      %s44 = sphi 0, %s43
      %s58 = sphi 0, %s44
      %s62 = sphi 0, %s62
      %s64 = sphi 0, %s62
      %s65 = sphi 0, %s64
      %s79 = sphi 0, %s65
      %s89 = sphi 0, %s91
      %s92 = sphi 0, %s89
      %s93 = sphi 0, %s92
      %s109 = sphi 0, %s93
      %s119 = sphi 0, %s121
      %s122 = sphi 0, %s119
      %s123 = sphi 0, %s122
      %s139 = sphi 0, %s123
      %s147 = sphi 0, %s149
      %s150 = sphi 0, %s147
      %s151 = sphi 0, %s150
      %s167 = sphi 0, %s151
      %s175 = sphi 0, %s177
      %s178 = sphi 0, %s175
      %s179 = sphi 0, %s178
      %s195 = sphi 0, %s179
    $region4: #{channel_uniform_forward.1} parent=1 // loop_header_branch
      %17 = sbr.rel (%p15) target = $region8
    $region5: #{channel_uniform_forward.1} parent=1 // loop_body
      %s19 = ssub.s32 %s14, 1
      %s20 = ssub.s32 %s14, 2
      %s30 = sadd.s32 1, %s23
      %p31 = scmp.ge.s32.totalorder %s30, 1
      %s32 = scalar_select %p31, 0, %s30
      %s33 = sadd.s32 1, %s22
      %s34 = scalar_select %p31, %s33, %s22
      %p35 = scmp.ge.s32.totalorder %s34, 1
      %s36 = scalar_select %p35, 0, %s34
      %s37 = sadd.s32 1, %s21
      %s38 = scalar_select %p35, %s37, %s21
      %p39 = scmp.ge.s32.totalorder %s38, 2
      %s40 = scalar_select %p39, 0, %s38
      %s42 = sadd.s32 %s41, 1
      %p45 = scmp.eq.s32.totalorder %s14, 1
      %p46 = scmp.ne.s32.totalorder %s41, %s43
      %p47 = scmp.eq.s32.totalorder %s14, 0
      %p48 = por %p46, %p47
      %p49 = scmp.ne.s32.totalorder %s41, %s43
      %p50 = scmp.eq.s32.totalorder %s19, 1
      %p51 = por %p49, %p50
      %p52 = scmp.ne.s32.totalorder %s43, %s44
      %p53 = scmp.eq.s32.totalorder %s19, 0
      %p54 = por %p52, %p53
      %p55 = scmp.ne.s32.totalorder %s43, %s44
      %p56 = scmp.eq.s32.totalorder %s20, 1
      %p57 = por %p55, %p56
      %p59 = scmp.ne.s32.totalorder %s44, %s58
      %p60 = scmp.eq.s32.totalorder %s20, 0
      %p61 = por %p59, %p60
      %s63 = sadd.s32 %s62, 1
      %p66 = scmp.eq.s32.totalorder %s14, 1
      %p67 = scmp.ne.s32.totalorder %s62, %s64
      %p68 = scmp.eq.s32.totalorder %s14, 0
      %p69 = por %p67, %p68
      %p70 = scmp.ne.s32.totalorder %s62, %s64
      %p71 = scmp.eq.s32.totalorder %s19, 1
      %p72 = por %p70, %p71
      %p73 = scmp.ne.s32.totalorder %s64, %s65
      %p74 = scmp.eq.s32.totalorder %s19, 0
      %p75 = por %p73, %p74
      %p76 = scmp.ne.s32.totalorder %s64, %s65
      %p77 = scmp.eq.s32.totalorder %s20, 1
      %p78 = por %p76, %p77
      %p80 = scmp.ne.s32.totalorder %s65, %s79
      %p81 = scmp.eq.s32.totalorder %s20, 0
      %p82 = por %p80, %p81
      %s83 = sadd.s32 %s22, %s23
      %s84 = sadd.s32 %s36, %s32
      %s85 = ssub.s32 %s21, %s40
      %s86 = ssub.s32 %s83, %s84
      %s87 = sor.u32 %s85, %s86
      %p88 = scmp.eq.s32.totalorder %s87, 0
      %s90 = sadd.s32 %s89, 1
      %s91 = scalar_select %p88, %s89, %s90
      %p94 = pneg %p88
      %p95 = scmp.eq.s32.totalorder %s14, 1
      %p96 = por %p94, %p95
      %p97 = scmp.ne.s32.totalorder %s89, %s92
      %p98 = scmp.eq.s32.totalorder %s14, 0
      %p99 = por %p97, %p98
      %p100 = scmp.ne.s32.totalorder %s89, %s92
      %p101 = scmp.eq.s32.totalorder %s19, 1
      %p102 = por %p100, %p101
      %p103 = scmp.ne.s32.totalorder %s92, %s93
      %p104 = scmp.eq.s32.totalorder %s19, 0
      %p105 = por %p103, %p104
      %p106 = scmp.ne.s32.totalorder %s92, %s93
      %p107 = scmp.eq.s32.totalorder %s20, 1
      %p108 = por %p106, %p107
      %p110 = scmp.ne.s32.totalorder %s93, %s109
      %p111 = scmp.eq.s32.totalorder %s20, 0
      %p112 = por %p110, %p111
      %s113 = sadd.s32 %s22, %s23
      %s114 = sadd.s32 %s36, %s32
      %s115 = ssub.s32 %s21, %s40
      %s116 = ssub.s32 %s113, %s114
      %s117 = sor.u32 %s115, %s116
      %p118 = scmp.eq.s32.totalorder %s117, 0
      %s120 = sadd.s32 %s119, 1
      %s121 = scalar_select %p118, %s119, %s120
      %p124 = pneg %p118
      %p125 = scmp.eq.s32.totalorder %s14, 1
      %p126 = por %p124, %p125
      %p127 = scmp.ne.s32.totalorder %s119, %s122
      %p128 = scmp.eq.s32.totalorder %s14, 0
      %p129 = por %p127, %p128
      %p130 = scmp.ne.s32.totalorder %s119, %s122
      %p131 = scmp.eq.s32.totalorder %s19, 1
      %p132 = por %p130, %p131
      %p133 = scmp.ne.s32.totalorder %s122, %s123
      %p134 = scmp.eq.s32.totalorder %s19, 0
      %p135 = por %p133, %p134
      %p136 = scmp.ne.s32.totalorder %s122, %s123
      %p137 = scmp.eq.s32.totalorder %s20, 1
      %p138 = por %p136, %p137
      %p140 = scmp.ne.s32.totalorder %s123, %s139
      %p141 = scmp.eq.s32.totalorder %s20, 0
      %p142 = por %p140, %p141
      %s143 = sadd.s32 %s21, %s22
      %s144 = sadd.s32 %s40, %s36
      %s145 = ssub.s32 %s143, %s144
      %p146 = scmp.eq.s32.totalorder %s145, 0
      %s148 = sadd.s32 %s147, 1
      %s149 = scalar_select %p146, %s147, %s148
      %p152 = pneg %p146
      %p153 = scmp.eq.s32.totalorder %s14, 1
      %p154 = por %p152, %p153
      %p155 = scmp.ne.s32.totalorder %s147, %s150
      %p156 = scmp.eq.s32.totalorder %s14, 0
      %p157 = por %p155, %p156
      %p158 = scmp.ne.s32.totalorder %s147, %s150
      %p159 = scmp.eq.s32.totalorder %s19, 1
      %p160 = por %p158, %p159
      %p161 = scmp.ne.s32.totalorder %s150, %s151
      %p162 = scmp.eq.s32.totalorder %s19, 0
      %p163 = por %p161, %p162
      %p164 = scmp.ne.s32.totalorder %s150, %s151
      %p165 = scmp.eq.s32.totalorder %s20, 1
      %p166 = por %p164, %p165
      %p168 = scmp.ne.s32.totalorder %s151, %s167
      %p169 = scmp.eq.s32.totalorder %s20, 0
      %p170 = por %p168, %p169
      %s171 = sadd.s32 %s21, %s22
      %s172 = sadd.s32 %s40, %s36
      %s173 = ssub.s32 %s171, %s172
      %p174 = scmp.eq.s32.totalorder %s173, 0
      %s176 = sadd.s32 %s175, 1
      %s177 = scalar_select %p174, %s175, %s176
      %p180 = pneg %p174
      %p181 = scmp.eq.s32.totalorder %s14, 1
      %p182 = por %p180, %p181
      %p183 = scmp.ne.s32.totalorder %s175, %s178
      %p184 = scmp.eq.s32.totalorder %s14, 0
      %p185 = por %p183, %p184
      %p186 = scmp.ne.s32.totalorder %s175, %s178
      %p187 = scmp.eq.s32.totalorder %s19, 1
      %p188 = por %p186, %p187
      %p189 = scmp.ne.s32.totalorder %s178, %s179
      %p190 = scmp.eq.s32.totalorder %s19, 0
      %p191 = por %p189, %p190
      %p192 = scmp.ne.s32.totalorder %s178, %s179
      %p193 = scmp.eq.s32.totalorder %s20, 1
      %p194 = por %p192, %p193
      %p196 = scmp.ne.s32.totalorder %s179, %s195
      %p197 = scmp.eq.s32.totalorder %s20, 0
      %p198 = por %p196, %p197
      %p199 = scmp.le.s32.totalorder 1, %s14
      %p200 = scmp.lt.s32.totalorder %s14, 3
      %p201 = pnand %p199, %p200
      %p202 = pneg %p201
      // Predicated region
      $region9: #{channel_uniform_forward.1} parent=5 // pred_check
        _
      $region10: #{channel_uniform_forward.1} parent=5 // pred_check_branch
        %204 = sbr.rel (%p201) target = $region12
      $region11: #{channel_uniform_forward.1} parent=5 // pred_region
        %s205 = ssub.s32 %s14, 1
        // Predicated region
        $region13: #{channel_uniform_forward.1} parent=11 // pred_check
          %p206 = pneg %p54
        $region14: #{channel_uniform_forward.1} parent=11 // pred_check_branch
          %208 = sbr.rel (%p206) target = $region16
        $region15: #{channel_uniform_forward.1} parent=11 // pred_region
          %s210 = ssub.s32 16, 16
          %211 = vsyncadd [#allocation4], %s210
          %s213 = sshll.u32 %s0, 4
          %s214 = int_to_ptr.vmem [resolvable:$true] %s213
          %216 = dma.vmem_to_smem %s214, 16, [#allocation3], [#allocation4]
        $region16: #{channel_uniform_forward.1} parent=11 // pred_fallthru
          _
        // Predicated region
        $region17: #{channel_uniform_forward.1} parent=11 // pred_check
          %p217 = pneg %p75
        $region18: #{channel_uniform_forward.1} parent=11 // pred_check_branch
          %219 = sbr.rel (%p217) target = $region20
        $region19: #{channel_uniform_forward.1} parent=11 // pred_region
          _
        $region20: #{channel_uniform_forward.1} parent=11 // pred_fallthru
          _
      $region12: #{channel_uniform_forward.1} parent=5 // pred_fallthru
        _
      %p220 = scmp.lt.s32.totalorder %s14, 2
      // Predicated region
      $region21: #{channel_uniform_forward.1} parent=5 // pred_check
        %p221 = pneg %p220
      $region22: #{channel_uniform_forward.1} parent=5 // pred_check_branch
        %223 = sbr.rel (%p221) target = $region24
      $region23: #{channel_uniform_forward.1} parent=5 // pred_region
        // Predicated region
        $region25: #{channel_uniform_forward.1} parent=23 // pred_check
          %p224 = pneg %p99
        $region26: #{channel_uniform_forward.1} parent=23 // pred_check_branch
          %226 = sbr.rel (%p224) target = $region28
        $region27: #{channel_uniform_forward.1} parent=23 // pred_region
          %s227 = sadd.s32 %s22, %s23
          %p228 = scmp.lt.s32.totalorder %s21, 1
          %s229 = scalar_select %p228, %s21, 1
          %p230 = scmp.lt.s32.totalorder %s227, 0
          %s231 = scalar_select %p230, %s227, 0
          %s232 = sadd.s32 %s231, %s229
          %s233 = smul.addr %s232, 2
          %s234 = scalar_lea.vmem %s2, %s233
          %s235 = sadd.s32 %s22, %s23
        $region28: #{channel_uniform_forward.1} parent=23 // pred_fallthru
          _
      $region24: #{channel_uniform_forward.1} parent=5 // pred_fallthru
        _
      %p236 = scmp.le.s32.totalorder 1, %s14
      %p237 = scmp.lt.s32.totalorder %s14, 3
      %p238 = pnand %p236, %p237
      %p239 = pneg %p238
      // Predicated region
      $region29: #{channel_uniform_forward.1} parent=5 // pred_check
        _
      $region30: #{channel_uniform_forward.1} parent=5 // pred_check_branch
        %241 = sbr.rel (%p238) target = $region32
      $region31: #{channel_uniform_forward.1} parent=5 // pred_region
        %s242 = ssub.s32 %s14, 1
        // Predicated region
        $region33: #{channel_uniform_forward.1} parent=31 // pred_check
          %p243 = pneg %p54
        $region34: #{channel_uniform_forward.1} parent=31 // pred_check_branch
          %245 = sbr.rel (%p243) target = $region36
        $region35: #{channel_uniform_forward.1} parent=31 // pred_region
          %246 = dma.done [#allocation4], 16
        $region36: #{channel_uniform_forward.1} parent=31 // pred_fallthru
          _
        %247 = sfence
        %p248 = pneg %p54
        %p249 = pneg %p51
        %p250 = pneg %p75
        %p251 = pneg %p72
        %s252 = sadd.s32 %s25, %s26
        %p253 = scmp.lt.s32.totalorder %s24, 1
        %s254 = scalar_select %p253, %s24, 1
        %p255 = scmp.lt.s32.totalorder %s252, 0
        %s256 = scalar_select %p255, %s252, 0
        %s257 = sadd.s32 %s256, %s254
        %s258 = smul.addr %s257, 2
        %s259 = scalar_lea.vmem %s2, %s258
        %p260 = pneg %p105
        %p261 = pneg %p102
        %p262 = pneg %p135
        %p263 = pneg %p132
        %s264 = sadd.s32 %s25, %s26
        %p265 = scmp.lt.s32.totalorder %s24, 1
        %s266 = scalar_select %p265, %s24, 1
        %p267 = scmp.lt.s32.totalorder %s264, 0
        %s268 = scalar_select %p267, %s264, 0
        %s269 = sadd.s32 %s268, %s266
        %s270 = smul.addr %s269, 2
        %s271 = scalar_lea.vmem %s3, %s270
        %p272 = pneg %p163
        %p273 = pneg %p160
        %s274 = sadd.s32 %s24, %s25
        %p275 = scmp.lt.s32.totalorder %s274, 1
        %s276 = scalar_select %p275, %s274, 1
        %s277 = scalar_lea.vmem %s4, %s276
        %p278 = pneg %p191
        %p279 = pneg %p188
        %s280 = sadd.s32 %s24, %s25
        %p281 = scmp.lt.s32.totalorder %s280, 1
        %s282 = scalar_select %p281, %s280, 1
        %s283 = scalar_lea.vmem %s5, %s282
        %s284 = sadd.s32 %s25, %s26
        %p285 = scmp.lt.s32.totalorder %s24, 1
        %s286 = scalar_select %p285, %s24, 1
        %p287 = scmp.lt.s32.totalorder %s284, 0
        %s288 = scalar_select %p287, %s284, 0
        %s289 = sadd.s32 %s288, %s286
        %s290 = smul.addr %s289, 2
        %s291 = scalar_lea.vmem %s2, %s290
        %s292 = sadd.s32 %s25, %s26
        %s293 = sadd.s32 %s25, %s26
        %p294 = scmp.lt.s32.totalorder %s24, 1
        %s295 = scalar_select %p294, %s24, 1
        %p296 = scmp.lt.s32.totalorder %s293, 0
        %s297 = scalar_select %p296, %s293, 0
        %s298 = sadd.s32 %s297, %s295
        %s299 = smul.addr %s298, 2
        %s300 = scalar_lea.vmem %s3, %s299
        %s301 = sadd.s32 %s25, %s26
        %s302 = sadd.s32 %s24, %s25
        %p303 = scmp.lt.s32.totalorder %s302, 1
        %s304 = scalar_select %p303, %s302, 1
        %s305 = scalar_lea.vmem %s4, %s304
        %s306 = sadd.s32 %s24, %s25
        %s307 = sadd.s32 %s24, %s25
        %p308 = scmp.lt.s32.totalorder %s307, 1
        %s309 = scalar_select %p308, %s307, 1
        %s310 = scalar_lea.vmem %s5, %s309
        %s311 = sadd.s32 %s24, %s25
        %s312 = sld [smem:[#allocation3]]
        %s313 = sld [smem:[#allocation3 + $0x1]]
        %s314 = sld [smem:[#allocation3 + $0x2]]
        %p315 = scmp.eq.s32.totalorder %s26, 0
        // Predicated region
        $region37: #{channel_uniform_forward.1} parent=31 // pred_check
          %p316 = pneg %p315
        $region38: #{channel_uniform_forward.1} parent=31 // pred_check_branch
          %318 = sbr.rel (%p316) target = $region40
        $region39: #{channel_uniform_forward.1} parent=31 // pred_region
          %319 = vst [vmem:[%s305] sm:$0x1] 0.0
          %320 = vst [vmem:[%s310] sm:$0x1] 0.0
        $region40: #{channel_uniform_forward.1} parent=31 // pred_fallthru
          _
        %v321 = vlaneseq
        %v322 = vshrl.u32 %v321, 7
        %v323 = vlaneseq
        %v324 = vand.u32 %v323, 127
        %s325 = sadd.s32 %s25, %s26
        %s326 = smul.u32 %s325, 2
        %v327 = vstv %s326
        %v328 = vadd.s32 %v327, %v322
        %v329 = vmul.u32 %v328, 128
        %v330 = vadd.s32 %v329, %v324
        %s331 = sld [smem:[#allocation2]]
        %s332 = smul.u32 %s331, 2654435769
        %s333 = smul.u32 %s24, 2246822507
        %s334 = sadd.s32 %s332, %s333
        %v335 = vmul.u32 %v330, 2769414579
        %v336 = vstv %s334
        %v337 = vadd.s32 %v335, %v336
        %v338 = vshrl.u32 %v337, 16
        %v339 = vxor.u32 %v337, %v338
        %v340 = vmul.u32 %v339, 2146121005
        %v341 = vshrl.u32 %v340, 15
        %v342 = vxor.u32 %v340, %v341
        %v343 = vmul.u32 %v342, 2221713035
        %v344 = vshrl.u32 %v343, 16
        %v345 = vxor.u32 %v343, %v344
        %v346 = vshrl.u32 %v345, 9
        %v347 = vcvt.s32.f32 %v346
        %v348 = vstv %s314
        %v349 = vmul.f32 %v347, %v348
        %v350 = vstv %s312
        %v351 = vsub.f32 %v349, %v350
        %v352 = vld [vmem:[%s291] sm:$0x3]
        %v353 = vstv %s313
        %v354 = vmul.f32 %v352, %v353
        %v355 = vround.ne.pseudo %v354
        %v356 = vmul.f32 %v355, %v350
        %v357 = vadd.f32 %v352, %v351
        %v358 = vsub.f32 %v357, %v356
        %359 = vst [vmem:[%s300] sm:$0x3] %v356
        %v360 = vld [vmem:[%s305] sm:$0x1]
        %v361 = vmul.f32 %v358, %v358
        %vm362 = vcmask 1041408
        %v363 = vsel %vm362, %v361, 0.0
        %v364 = vrot.slane %v363, 4
        %v365 = vadd.f32 %v363, %v364
        %v366 = vrot.slane %v365, 2
        %v367 = vadd.f32 %v365, %v366
        %v368 = vrot.slane %v367, 1
        %v369 = vadd.f32 %v367, %v368
        %v370 = vadd.f32 %v360, %v369
        %371 = vst [vmem:[%s305] sm:$0x1] %v370
        %v372 = vld [vmem:[%s310] sm:$0x1]
        %v373 = vmul.f32 %v351, %v351
        %v374 = vsel %vm362, %v373, 0.0
        %v375 = vrot.slane %v374, 4
        %v376 = vadd.f32 %v374, %v375
        %v377 = vrot.slane %v376, 2
        %v378 = vadd.f32 %v376, %v377
        %v379 = vrot.slane %v378, 1
        %v380 = vadd.f32 %v378, %v379
        %v381 = vadd.f32 %v372, %v380
        %382 = vst [vmem:[%s310] sm:$0x1] %v381
        %s383 = sadd.s32 %s25, %s26
        %p384 = scmp.lt.s32.totalorder %s24, 1
        %s385 = scalar_select %p384, %s24, 1
        %p386 = scmp.lt.s32.totalorder %s383, 0
        %s387 = scalar_select %p386, %s383, 0
        %s388 = sadd.s32 %s387, %s385
        %s389 = smul.addr %s388, 2
        %s390 = scalar_lea.vmem %s3, %s389
        %s391 = sadd.s32 %s24, %s25
        %p392 = scmp.lt.s32.totalorder %s391, 1
        %s393 = scalar_select %p392, %s391, 1
        %s394 = scalar_lea.vmem %s4, %s393
        %s395 = sadd.s32 %s24, %s25
        %p396 = scmp.lt.s32.totalorder %s395, 1
        %s397 = scalar_select %p396, %s395, 1
        %s398 = scalar_lea.vmem %s5, %s397
        // Predicated region
        $region41: #{channel_uniform_forward.1} parent=31 // pred_check
          %p399 = pneg %p132
        $region42: #{channel_uniform_forward.1} parent=31 // pred_check_branch
          %401 = sbr.rel (%p399) target = $region44
        $region43: #{channel_uniform_forward.1} parent=31 // pred_region
          %s402 = sadd.s32 %s25, %s26
        $region44: #{channel_uniform_forward.1} parent=31 // pred_fallthru
          _
        // Predicated region
        $region45: #{channel_uniform_forward.1} parent=31 // pred_check
          %p403 = pneg %p160
        $region46: #{channel_uniform_forward.1} parent=31 // pred_check_branch
          %405 = sbr.rel (%p403) target = $region48
        $region47: #{channel_uniform_forward.1} parent=31 // pred_region
          %s406 = sadd.s32 %s24, %s25
        $region48: #{channel_uniform_forward.1} parent=31 // pred_fallthru
          _
        // Predicated region
        $region49: #{channel_uniform_forward.1} parent=31 // pred_check
          %p407 = pneg %p188
        $region50: #{channel_uniform_forward.1} parent=31 // pred_check_branch
          %409 = sbr.rel (%p407) target = $region52
        $region51: #{channel_uniform_forward.1} parent=31 // pred_region
          %s410 = sadd.s32 %s24, %s25
        $region52: #{channel_uniform_forward.1} parent=31 // pred_fallthru
          _
      $region32: #{channel_uniform_forward.1} parent=5 // pred_fallthru
        _
      %p411 = scmp.le.s32.totalorder 2, %s14
      // Predicated region
      $region53: #{channel_uniform_forward.1} parent=5 // pred_check
        %p412 = pneg %p411
      $region54: #{channel_uniform_forward.1} parent=5 // pred_check_branch
        %414 = sbr.rel (%p412) target = $region56
      $region55: #{channel_uniform_forward.1} parent=5 // pred_region
        %s415 = ssub.s32 %s14, 2
        // Predicated region
        $region57: #{channel_uniform_forward.1} parent=55 // pred_check
          %p416 = pneg %p138
        $region58: #{channel_uniform_forward.1} parent=55 // pred_check_branch
          %418 = sbr.rel (%p416) target = $region60
        $region59: #{channel_uniform_forward.1} parent=55 // pred_region
          %s419 = sadd.s32 %s28, %s29
          %p420 = scmp.lt.s32.totalorder %s27, 1
          %s421 = scalar_select %p420, %s27, 1
          %p422 = scmp.lt.s32.totalorder %s419, 0
          %s423 = scalar_select %p422, %s419, 0
          %s424 = sadd.s32 %s423, %s421
          %s425 = smul.addr %s424, 2
          %s426 = scalar_lea.vmem %s3, %s425
        $region60: #{channel_uniform_forward.1} parent=55 // pred_fallthru
          _
        // Predicated region
        $region61: #{channel_uniform_forward.1} parent=55 // pred_check
          %p427 = pneg %p166
        $region62: #{channel_uniform_forward.1} parent=55 // pred_check_branch
          %429 = sbr.rel (%p427) target = $region64
        $region63: #{channel_uniform_forward.1} parent=55 // pred_region
          %s430 = sadd.s32 %s27, %s28
          %p431 = scmp.lt.s32.totalorder %s430, 1
          %s432 = scalar_select %p431, %s430, 1
          %s433 = scalar_lea.vmem %s4, %s432
        $region64: #{channel_uniform_forward.1} parent=55 // pred_fallthru
          _
        // Predicated region
        $region65: #{channel_uniform_forward.1} parent=55 // pred_check
          %p434 = pneg %p194
        $region66: #{channel_uniform_forward.1} parent=55 // pred_check_branch
          %436 = sbr.rel (%p434) target = $region68
        $region67: #{channel_uniform_forward.1} parent=55 // pred_region
          %s437 = sadd.s32 %s27, %s28
          %p438 = scmp.lt.s32.totalorder %s437, 1
          %s439 = scalar_select %p438, %s437, 1
          %s440 = scalar_lea.vmem %s5, %s439
        $region68: #{channel_uniform_forward.1} parent=55 // pred_fallthru
          _
      $region56: #{channel_uniform_forward.1} parent=5 // pred_fallthru
        _
    $region6: #{channel_uniform_forward.1} parent=1 // loop_footer
      %s18 = sadd.s32 1, %s14
    $region7: #{channel_uniform_forward.1} parent=1 // loop_footer_branch
      %13 = sbr.rel target = $region3
    $region8: #{channel_uniform_forward.1} parent=1 // loop_exit
      _
    %441 = vsyncpa [#allocation4], 1
    %s442 = scalar_lea.sflag [#allocation4], 1
    %443 = vsyncpa %s442, 1

</llo_original>
